<compile_context>
chip_gen: v6e
topology: v6e:2x2x1
jax: 0.10.0
libtpu: 0.0.40
codegen_flags: <defaults>
</compile_context>

<pallas_src>
import functools

import jax
import jax.numpy as jnp
import numpy as np
from jax.experimental import pallas as pl
from jax.experimental.pallas import tpu as pltpu


def _round_up(x, m):
    return (x + m - 1) // m * m


def _vmem_capacity_bytes():
    """Physical VMEM of the local TPU; conservative 64 MiB (v7x) fallback."""
    try:
        cap = getattr(pltpu.get_tpu_info(), "vmem_capacity_bytes", None)
        if cap:
            return int(cap)
    except Exception:
        pass
    return 64 << 20


_STEP_OVERHEAD_ROWS = 96  # ~0.35 us per grid step, expressed in "rows of work"


def _choose_tm(M, tm_target, min_steps=2):
    """Row tile: multiple of 128, <= tm_target, minimizing (padded rows +
    per-step overhead); keeps >= min_steps grid steps when M allows (v7x has
    2 TensorCores sharing the chip)."""
    m128 = _round_up(M, 128)
    cap = min(m128, _round_up(max(int(tm_target), 128), 128))
    if M >= min_steps * 128:
        cap = min(cap, _round_up(-(-M // min_steps), 128))
    best_tm, best_cost, best_mp = 128, None, None
    t = 128
    while t <= cap:
        mp = _round_up(M, t)
        steps = mp // t
        cost = mp + _STEP_OVERHEAD_ROWS * steps
        if (best_cost is None or cost < best_cost
                or (cost == best_cost and (mp, -t) < (best_mp, -best_tm))):
            best_tm, best_cost, best_mp = t, cost, mp
        t += 128
    return best_tm


def _choose_tk(K, Ep, tm_eff, cbytes, vmem_cap):
    """Return a K-reduction tile if the double-buffered full-K weight would
    overflow a generation-aware VMEM budget; None => no K split needed."""
    weight_budget = vmem_cap // 3
    if 2 * _round_up(K, 128) * Ep * cbytes <= weight_budget:
        return None
    denom = 2 * cbytes * (tm_eff + Ep)  # bytes per K-row of (LHS + weight) slabs
    return max(256, int((weight_budget // denom) // 256 * 256))


# ---------------------------------------------------------------------------
# Kernel epilogues (f32 math) + kernels
# ---------------------------------------------------------------------------
def _bias_store(acc, b_ref, o_ref):
    acc = acc + b_ref[...].astype(jnp.float32)
    o_ref[...] = acc.astype(o_ref.dtype)


def _bias_ln_store(acc, b_ref, g_ref, be_ref, o_ref, eps, e_true):
    # Padded E columns of acc are exactly zero (zero-padded weight AND bias),
    # so sums over Ep equal sums over the true E.  Keep that invariant!
    acc = acc + b_ref[...].astype(jnp.float32)
    s = jnp.sum(acc, axis=-1, keepdims=True)
    sq = jnp.sum(acc * acc, axis=-1, keepdims=True)
    mean = s * (1.0 / e_true)
    var = jnp.maximum(sq * (1.0 / e_true) - mean * mean, 0.0)  # cancellation guard
    inv = jax.lax.rsqrt(var + eps)
    acc = (acc - mean) * inv
    acc = acc * g_ref[...].astype(jnp.float32) + be_ref[...].astype(jnp.float32)
    o_ref[...] = acc.astype(o_ref.dtype)


def _pe_kernel(x_ref, w_ref, b_ref, o_ref):
    acc = jnp.dot(x_ref[...], w_ref[...], preferred_element_type=jnp.float32)
    _bias_store(acc, b_ref, o_ref)


def _pe_ln_kernel(x_ref, w_ref, b_ref, g_ref, be_ref, o_ref, *, eps, e_true):
    acc = jnp.dot(x_ref[...], w_ref[...], preferred_element_type=jnp.float32)
    _bias_ln_store(acc, b_ref, g_ref, be_ref, o_ref, eps, e_true)


def _pe_kernel_ksplit(x_ref, w_ref, b_ref, o_ref, acc_ref):
    @pl.when(pl.program_id(1) == 0)
    def _():
        acc_ref[...] = jnp.zeros_like(acc_ref)

    acc_ref[...] += jnp.dot(x_ref[...], w_ref[...],
                            preferred_element_type=jnp.float32)

    @pl.when(pl.program_id(1) == pl.num_programs(1) - 1)
    def _():
        _bias_store(acc_ref[...], b_ref, o_ref)


def _pe_ln_kernel_ksplit(x_ref, w_ref, b_ref, g_ref, be_ref, o_ref, acc_ref, *,
                         eps, e_true):
    @pl.when(pl.program_id(1) == 0)
    def _():
        acc_ref[...] = jnp.zeros_like(acc_ref)

    acc_ref[...] += jnp.dot(x_ref[...], w_ref[...],
                            preferred_element_type=jnp.float32)

    @pl.when(pl.program_id(1) == pl.num_programs(1) - 1)
    def _():
        _bias_ln_store(acc_ref[...], b_ref, g_ref, be_ref, o_ref, eps, e_true)


# ---------------------------------------------------------------------------
# im2col glue (plain JAX layout plumbing)
# ---------------------------------------------------------------------------
def _im2col(x, patch_size, stride, pad, patch_count):
    """x: (B, C, H, W) -> (B*N, C*ph*pw), each row flattened as (C, ph, pw)."""
    B, C, H, W = x.shape
    ph = pw = patch_size
    N = patch_count * patch_count
    # TODO(synk): fuse this rearrange into the kernel (read (1, C, ph, W) slabs
    # of x via BlockSpec and rearrange in VMEM) to remove the extra HBM round
    # trip that makes v6e HBM-bound; kept wrapper-side for portability.
    if stride == patch_size and pad == 0 and patch_count * stride == H == W:
        # Non-overlapping patches (standard ViT): pure reshape/transpose.
        p = x.reshape(B, C, patch_count, ph, patch_count, pw)
        p = p.transpose(0, 2, 4, 1, 3, 5)
        return p.reshape(B * N, C * ph * pw)
    # General (overlapping / padded) fallback: gather-based extraction.
    xp = jnp.pad(x, ((0, 0), (0, 0), (pad, pad), (pad, pad)))
    rows = (jnp.arange(patch_count) * stride)[:, None] + jnp.arange(ph)[None, :]
    cols = (jnp.arange(patch_count) * stride)[:, None] + jnp.arange(pw)[None, :]
    p = xp[:, :, rows[:, None, :, None], cols[None, :, None, :]]  # (B,C,oh,ow,ph,pw)
    p = p.transpose(0, 2, 3, 1, 4, 5)                             # (B,oh,ow,C,ph,pw)
    return p.reshape(B * N, C * ph * pw)


# ---------------------------------------------------------------------------
# Wrapper: padding, tiling decisions, pallas_call
# ---------------------------------------------------------------------------
def patch_embed_forward(x, weight, bias, gamma=None, beta=None, *,
                        img_size, patch_size, patch_count,
                        tm=None, tk=None, eps=1e-5,
                        compute_dtype=jnp.bfloat16, out_dtype=None):
    """x: (B, C, H, W) NCHW; weight: (E, C, ph, pw) OIHW; bias: (E,).
    Returns (B, patch_count**2, E) matching `proj(x).flatten(2).transpose(1,2)`
    (+ optional LayerNorm)."""
    B, C, H, W = x.shape
    assert H == img_size and W == img_size, "input image size mismatch"
    stride = img_size // patch_count
    pad = (stride * (patch_count - 1) + patch_size - img_size) // 2
    ph = pw = patch_size
    E = int(weight.shape[0])
    N = patch_count * patch_count
    K = C * ph * pw
    M = B * N
    # bf16 writeback by default: halves output HBM traffic on HBM-bound v6e.
    out_dtype = jnp.bfloat16 if out_dtype is None else out_dtype

    cbytes = jnp.dtype(compute_dtype).itemsize
    obytes = jnp.dtype(out_dtype).itemsize
    Ep = _round_up(E, 128)
    vmem_cap = _vmem_capacity_bytes()

    # --- row tile (>= 2 grid steps when M allows; minimizes padded rows) ---
    if tm is None:
        tm = 1024 if K * Ep * cbytes <= (4 << 20) else 512
    tm_eff = _choose_tm(M, tm)
    Mp = _round_up(M, tm_eff)

    # --- contraction padding / optional K-reduction tiling ---
    kp128, kp256 = _round_up(K, 128), _round_up(K, 256)
    # Prefer a 256-aligned K (matches v6e/v7x 2x256^2 MXUs) unless it inflates
    # K by more than ~12.5% over the 128-aligned pad.
    Kp = kp256 if (kp256 - kp128) * 8 <= kp128 else kp128
    if tk is None:
        tk = _choose_tk(K, Ep, tm_eff, cbytes, vmem_cap)
    ksplit = False
    if tk is not None:
        tk = int(min(_round_up(int(tk), 128), kp128))
        kp_split = _round_up(K, tk)
        if kp_split // tk > 1:
            ksplit, Kp = True, kp_split
        else:
            tk = None

    # --- im2col + zero padding, all in the bf16 compute dtype ---
    patches = _im2col(x.astype(compute_dtype), patch_size, stride, pad, patch_count)
    patches = jnp.pad(patches, ((0, Mp - M), (0, Kp - K)))

    w2 = weight.reshape(E, K).T.astype(compute_dtype)  # (K, E)
    w2 = jnp.pad(w2, ((0, Kp - K), (0, Ep - E)))
    b2 = jnp.pad(bias.astype(jnp.float32), (0, Ep - E)).reshape(1, Ep)

    with_norm = gamma is not None
    if with_norm:
        g2 = jnp.pad(gamma.astype(jnp.float32), (0, Ep - E)).reshape(1, Ep)
        be2 = jnp.pad(beta.astype(jnp.float32), (0, Ep - E)).reshape(1, Ep)

    if ksplit:
        kernel = (functools.partial(_pe_ln_kernel_ksplit, eps=eps, e_true=float(E))
                  if with_norm else _pe_kernel_ksplit)
    else:
        kernel = (functools.partial(_pe_ln_kernel, eps=eps, e_true=float(E))
                  if with_norm else _pe_kernel)

    kb = tk if ksplit else Kp
    cost = pl.CostEstimate(
        flops=2 * Mp * Kp * Ep,
        transcendentals=Mp if with_norm else 0,
        bytes_accessed=Mp * Kp * cbytes + Kp * Ep * cbytes + Mp * Ep * obytes)

    vmem_need = (2 * tm_eff * kb * cbytes          # LHS (double-buffered)
                 + 2 * kb * Ep * cbytes            # weight (conservatively x2)
                 + 2 * tm_eff * Ep * obytes        # output (double-buffered)
                 + (tm_eff * Ep * 4 if ksplit else 0)  # f32 accumulator
                 + 16 * Ep * 4)                    # bias / gamma / beta vectors
    # Never request the whole physical VMEM (v7x only has 64 MiB per core).
    vmem_limit = int(min(max(2 * vmem_need, 16 << 20), vmem_cap * 3 // 4))

    def _call(single_buffer):
        def inv_spec(shape):
            imap = (lambda i, k: (0, 0)) if ksplit else (lambda i: (0, 0))
            if single_buffer:
                # Grid-invariant operand: single buffer, no dead 2nd copy.
                return pl.BlockSpec(shape, imap, pipeline_mode=pl.Buffered(1))
            return pl.BlockSpec(shape, imap)

        if ksplit:
            grid = (Mp // tm_eff, Kp // tk)
            dims = ("parallel", "arbitrary")
            lhs_spec = pl.BlockSpec((tm_eff, tk), lambda i, k: (i, k))
            w_spec = pl.BlockSpec((tk, Ep), lambda i, k: (k, 0))
            out_spec = pl.BlockSpec((tm_eff, Ep), lambda i, k: (i, 0))
            scratch = [pltpu.VMEM((tm_eff, Ep), jnp.float32)]
        else:
            grid = (Mp // tm_eff,)
            dims = ("parallel",)
            lhs_spec = pl.BlockSpec((tm_eff, Kp), lambda i: (i, 0))
            w_spec = inv_spec((Kp, Ep))
            out_spec = pl.BlockSpec((tm_eff, Ep), lambda i: (i, 0))
            scratch = []

        in_specs = [lhs_spec, w_spec, inv_spec((1, Ep))]
        args = [patches, w2, b2]
        if with_norm:
            in_specs += [inv_spec((1, Ep)), inv_spec((1, Ep))]
            args += [g2, be2]

        return pl.pallas_call(
            kernel,
            out_shape=jax.ShapeDtypeStruct((Mp, Ep), out_dtype),
            grid_spec=pltpu.PrefetchScalarGridSpec(
                num_scalar_prefetch=0, grid=grid,
                in_specs=in_specs, out_specs=out_spec,
                scratch_shapes=scratch),
            compiler_params=pltpu.CompilerParams(
                dimension_semantics=dims, vmem_limit_bytes=vmem_limit),
            cost_estimate=cost,
        )(*args)

    try:
        out = _call(single_buffer=True)
    except Exception:
        # Portability fallback if pipeline_mode=pl.Buffered(1) is unsupported.
        out = _call(single_buffer=False)

    # NOTE: the [:, :E] slice is a strided copy only when Ep > E; standard ViT
    # widths (E multiple of 128) make it a no-op.
    return out[:M, :E].reshape(B, N, E)


# ---------------------------------------------------------------------------
# Reference (XLA conv, same bf16 inputs / f32 accumulation) + tests
# ---------------------------------------------------------------------------
def _reference(x, weight, bias, gamma, beta, img_size, patch_size, patch_count,
               eps=1e-5):
    B = x.shape[0]
    E = weight.shape[0]
    stride = img_size // patch_count
    pad = (stride * (patch_count - 1) + patch_size - img_size) // 2
    ref = jax.lax.conv_general_dilated(
        x.astype(jnp.bfloat16), weight.astype(jnp.bfloat16),
        window_strides=(stride, stride), padding=[(pad, pad), (pad, pad)],
        dimension_numbers=("NCHW", "OIHW", "NCHW"),
        preferred_element_type=jnp.float32)
    ref = ref.reshape(B, E, -1).transpose(0, 2, 1) + bias.reshape(1, 1, E)
    if gamma is not None:
        mean = jnp.mean(ref, axis=-1, keepdims=True)
        var = jnp.var(ref, axis=-1, keepdims=True)
        ref = (ref - mean) * jax.lax.rsqrt(var + eps) * gamma + beta
    return ref


if __name__ == "__main__":
    def _check(key, B, C, IMG, PATCH, COUNT, E, tk=None):
        kx, kw, kb, kg, kbe = jax.random.split(key, 5)
        x = jax.random.normal(kx, (B, C, IMG, IMG), dtype=jnp.float32)
        w = jax.random.normal(kw, (E, C, PATCH, PATCH), dtype=jnp.float32) * 0.02
        b = jax.random.normal(kb, (E,), dtype=jnp.float32) * 0.02
        g = 1.0 + 0.1 * jax.random.normal(kg, (E,), dtype=jnp.float32)
        be = 0.1 * jax.random.normal(kbe, (E,), dtype=jnp.float32)

        out = patch_embed_forward(x, w, b, img_size=IMG, patch_size=PATCH,
                                  patch_count=COUNT, tk=tk, out_dtype=jnp.float32)
        out_ln = patch_embed_forward(x, w, b, g, be, img_size=IMG,
                                     patch_size=PATCH, patch_count=COUNT, tk=tk,
                                     out_dtype=jnp.float32)
        out, out_ln = jax.block_until_ready((out, out_ln))

        ref = _reference(x, w, b, None, None, IMG, PATCH, COUNT)
        ref_ln = _reference(x, w, b, g, be, IMG, PATCH, COUNT)
        assert out.shape == (B, COUNT * COUNT, E)
        assert out_ln.shape == (B, COUNT * COUNT, E)
        np.testing.assert_allclose(np.asarray(out), np.asarray(ref),
                                   rtol=2e-3, atol=2e-3)
        np.testing.assert_allclose(np.asarray(out_ln), np.asarray(ref_ln),
                                   rtol=2e-3, atol=2e-3)
        return x, w, b, g, be, ref_ln

    k1, k2, k3 = jax.random.split(jax.random.PRNGKey(0), 3)

    # 1) Standard non-overlapping ViT config (stride == patch, pad == 0).
    x, w, b, g, be, ref_ln = _check(k1, B=2, C=4, IMG=16, PATCH=4, COUNT=4, E=32)

    # 1b) Default bf16 writeback path (perf default) on the same config.
    out_bf16 = patch_embed_forward(x, w, b, g, be, img_size=16, patch_size=4,
                                   patch_count=4)
    out_bf16 = jax.block_until_ready(out_bf16)
    assert out_bf16.dtype == jnp.bfloat16
    np.testing.assert_allclose(np.asarray(out_bf16.astype(jnp.float32)),
                               np.asarray(ref_ln), rtol=3e-2, atol=3e-2)

    # 2) Forced K-tiled reduction path (tk=128 -> two "arbitrary" K steps).
    _check(k2, B=2, C=4, IMG=16, PATCH=8, COUNT=2, E=32, tk=128)

    # 3) Overlapping / padded patches (stride < patch) -> gather im2col path.
    _check(k3, B=2, C=4, IMG=16, PATCH=6, COUNT=4, E=32)

    print("KERNEL_OK")
</pallas_src>

<mosaic_0001>
module attributes {stable_mosaic.version = 11 : i64} {
  func.func @_pe_kernel(%arg0: i32, %arg1: memref<128x128xbf16, #tpu.memory_space<vmem>>, %arg2: memref<128x128xbf16, #tpu.memory_space<vmem>>, %arg3: memref<1x128xf32, #tpu.memory_space<vmem>>, %arg4: memref<128x128xf32, #tpu.memory_space<vmem>>) attributes {dimension_semantics = [#tpu.dimension_semantics<parallel>], iteration_bounds = array<i64: 1>, scalar_prefetch = 0 : i64, scratch_operands = 0 : i64, tpu.core_type = #tpu.core_type<tc>, window_params = [{transform_indices = @transform_0, window_bounds = array<i64: 128, 128>}, {pipeline_mode = #tpu.pipeline_mode<synchronous>, transform_indices = @transform_1, window_bounds = array<i64: 128, 128>}, {pipeline_mode = #tpu.pipeline_mode<synchronous>, transform_indices = @transform_2, window_bounds = array<i64: 1, 128>}, {transform_indices = @transform_3, window_bounds = array<i64: 128, 128>}]} {
    %c0 = arith.constant 0 : index
    %c0_0 = arith.constant 0 : index
    %0 = vector.load %arg1[%c0, %c0_0] : memref<128x128xbf16, #tpu.memory_space<vmem>>, vector<128x128xbf16>
    %c0_1 = arith.constant 0 : index
    %c0_2 = arith.constant 0 : index
    %1 = vector.load %arg2[%c0_1, %c0_2] : memref<128x128xbf16, #tpu.memory_space<vmem>>, vector<128x128xbf16>
    %cst = arith.constant dense<0.000000e+00> : vector<128x128xf32>
    %2 = tpu.matmul %0, %1, %cst {dimension_numbers = #tpu.dot_dimension_numbers<[1], [0], [0], [1], [0, 0, 1, 1], [], []>} : vector<128x128xbf16>, vector<128x128xbf16>, vector<128x128xf32> -> vector<128x128xf32>
    %c0_3 = arith.constant 0 : index
    %c0_4 = arith.constant 0 : index
    %3 = vector.load %arg3[%c0_3, %c0_4] : memref<1x128xf32, #tpu.memory_space<vmem>>, vector<1x128xf32>
    %4 = vector.broadcast %3 : vector<1x128xf32> to vector<128x128xf32>
    %5 = arith.addf %2, %4 : vector<128x128xf32>
    %c0_5 = arith.constant 0 : index
    %c0_6 = arith.constant 0 : index
    %6 = vector.load %arg4[%c0_5, %c0_6] : memref<128x128xf32, #tpu.memory_space<vmem>>, vector<128x128xf32>
    tpu.vector_store %arg4[%c0_5, %c0_6], %5 {strides = array<i32>} : memref<128x128xf32, #tpu.memory_space<vmem>>, vector<128x128xf32>,
    return
  }
  func.func @transform_0(%arg0: i32) -> (i32, i32) {
    %c0_i32 = arith.constant 0 : i32
    %c0_i32_0 = arith.constant 0 : i32
    return %arg0, %c0_i32 : i32, i32
  }
  func.func @transform_1(%arg0: i32) -> (i32, i32) {
    %c0_i32 = arith.constant 0 : i32
    %c0_i32_0 = arith.constant 0 : i32
    %c0_i32_1 = arith.constant 0 : i32
    return %c0_i32, %c0_i32_0 : i32, i32
  }
  func.func @transform_2(%arg0: i32) -> (i32, i32) {
    %c0_i32 = arith.constant 0 : i32
    %c0_i32_0 = arith.constant 0 : i32
    %c0_i32_1 = arith.constant 0 : i32
    return %c0_i32, %c0_i32_0 : i32, i32
  }
  func.func @transform_3(%arg0: i32) -> (i32, i32) {
    %c0_i32 = arith.constant 0 : i32
    %c0_i32_0 = arith.constant 0 : i32
    return %arg0, %c0_i32 : i32, i32
  }
}

module attributes {stable_mosaic.version = 11 : i64} {
  func.func @_pe_kernel(%arg0: i32, %arg1: memref<128x128xbf16, #tpu.memory_space<vmem>>, %arg2: memref<128x128xbf16, #tpu.memory_space<vmem>>, %arg3: memref<1x128xf32, #tpu.memory_space<vmem>>, %arg4: memref<128x128xf32, #tpu.memory_space<vmem>>) attributes {dimension_semantics = [#tpu.dimension_semantics<parallel>], iteration_bounds = array<i64: 1>, scalar_prefetch = 0 : i64, scratch_operands = 0 : i64, tpu.core_type = #tpu.core_type<tc>, window_params = [{transform_indices = @transform_0, window_bounds = array<i64: 128, 128>}, {pipeline_mode = #tpu.pipeline_mode<synchronous>, transform_indices = @transform_1, window_bounds = array<i64: 128, 128>}, {pipeline_mode = #tpu.pipeline_mode<synchronous>, transform_indices = @transform_2, window_bounds = array<i64: 1, 128>}, {transform_indices = @transform_3, window_bounds = array<i64: 128, 128>}]} {
    %c0 = arith.constant 0 : index
    %c0_0 = arith.constant 0 : index
    %0 = vector.load %arg1[%c0, %c0_0] : memref<128x128xbf16, #tpu.memory_space<vmem>>, vector<128x128xbf16>
    %c0_1 = arith.constant 0 : index
    %c0_2 = arith.constant 0 : index
    %1 = vector.load %arg2[%c0_1, %c0_2] : memref<128x128xbf16, #tpu.memory_space<vmem>>, vector<128x128xbf16>
    %cst = arith.constant dense<0.000000e+00> : vector<128x128xf32>
    %2 = tpu.matmul %0, %1, %cst {dimension_numbers = #tpu.dot_dimension_numbers<[1], [0], [0], [1], [0, 0, 1, 1], [], []>} : vector<128x128xbf16>, vector<128x128xbf16>, vector<128x128xf32> -> vector<128x128xf32>
    %c0_3 = arith.constant 0 : index
    %c0_4 = arith.constant 0 : index
    %3 = vector.load %arg3[%c0_3, %c0_4] : memref<1x128xf32, #tpu.memory_space<vmem>>, vector<1x128xf32>
    %4 = vector.broadcast %3 : vector<1x128xf32> to vector<128x128xf32>
    %5 = arith.addf %2, %4 : vector<128x128xf32>
    %c0_5 = arith.constant 0 : index
    %c0_6 = arith.constant 0 : index
    %6 = vector.load %arg4[%c0_5, %c0_6] : memref<128x128xf32, #tpu.memory_space<vmem>>, vector<128x128xf32>
    tpu.vector_store %arg4[%c0_5, %c0_6], %5 {strides = array<i32>} : memref<128x128xf32, #tpu.memory_space<vmem>>, vector<128x128xf32>,
    return
  }
  func.func @transform_0(%arg0: i32) -> (i32, i32) {
    %c0_i32 = arith.constant 0 : i32
    %c0_i32_0 = arith.constant 0 : i32
    return %arg0, %c0_i32 : i32, i32
  }
  func.func @transform_1(%arg0: i32) -> (i32, i32) {
    %c0_i32 = arith.constant 0 : i32
    %c0_i32_0 = arith.constant 0 : i32
    %c0_i32_1 = arith.constant 0 : i32
    return %c0_i32, %c0_i32_0 : i32, i32
  }
  func.func @transform_2(%arg0: i32) -> (i32, i32) {
    %c0_i32 = arith.constant 0 : i32
    %c0_i32_0 = arith.constant 0 : i32
    %c0_i32_1 = arith.constant 0 : i32
    return %c0_i32, %c0_i32_0 : i32, i32
  }
  func.func @transform_3(%arg0: i32) -> (i32, i32) {
    %c0_i32 = arith.constant 0 : i32
    %c0_i32_0 = arith.constant 0 : i32
    return %arg0, %c0_i32 : i32, i32
  }
}

</mosaic_0001>

<llo_original>
// kernel: tpu_custom_call.1
$region0: #{tpu_custom_call.1}
  #allocation0 [shape = 'u32[]', space=smem, size = 0x4, offset = 0x4, fixed_abs, tag = 'smem constant byte address 0x4 - core index']
  #allocation1 [shape = 'u32[144,128]{1,0:T(1,128)}', space=vmem, size = 0x12000, scoped, tag = 'internal scratch']
  %s0 = inlined_call_operand.hbm [shape: bf16[128,128], index: 0, kind: input, shape index: {}]
  %s1 = inlined_call_operand.hbm [shape: bf16[128,128], index: 1, kind: input, shape index: {}]
  %s2 = inlined_call_operand.vmem [shape: f32[1,128], index: 2, kind: input, shape index: {}]
  %s3 = inlined_call_operand.hbm [shape: f32[128,128], index: 3, kind: output, shape index: {}]
  %s4 = sld [smem:[#allocation0]]
  $region30: #{tpu_custom_call.1} parent=0
    _
  %s6 = ssub.s32 1, %s4
  %s7 = scalar_select 0, %s6, %s4
  $region1: #{tpu_custom_call.1} parent=0
    #allocation2 [shape = 'u8[32768]{0}', space=vmem, size = 0x8000, scoped, tag = 'input window, operand 0, single buffered']
    #allocation3 [shape = 's32[1]{0}', space=sflag, size = 0x4, scoped, tag = 'scoped memory for tpu_custom_call.1']
    #allocation4 [shape = 's32[1]{0}', space=sflag, size = 0x4, scoped, tag = 'scoped memory for tpu_custom_call.1']
    #allocation5 [shape = 'u8[32768]{0}', space=vmem, size = 0x8000, scoped, tag = 'input window, operand 1, single buffered']
    #allocation6 [shape = 's32[1]{0}', space=sflag, size = 0x4, scoped, tag = 'scoped memory for tpu_custom_call.1']
    #allocation7 [shape = 'u8[65536]{0}', space=vmem, size = 0x10000, scoped, tag = 'output window, operand 0, single buffered']
    %8 = vsyncpa [#allocation3], 0
    %9 = vsyncpa [#allocation6], 0
    %10 = vsyncpa [#allocation4], 0
    // Predicated region
    $region2: #{tpu_custom_call.1} parent=1 // pred_check
      _
    $region3: #{tpu_custom_call.1} parent=1 // pred_check_branch
      %12 = sbr.rel (0) target = $region5
    $region4: #{tpu_custom_call.1} parent=1 // pred_region
      %s14 = ssub.s32 1024, 1024
      %15 = vsyncadd [#allocation3], %s14
      %s16 = sshll.u32 [#allocation2], 4
      %s17 = int_to_ptr.vmem [resolvable:$true] %s16
      %22 = dma.hbm_to_vmem [thread:$0]  %s0, 1024, %s17, [#allocation3], 64, 64, 4
    $region5: #{tpu_custom_call.1} parent=1 // pred_fallthru
      _
    // Predicated region
    $region6: #{tpu_custom_call.1} parent=1 // pred_check
      _
    $region7: #{tpu_custom_call.1} parent=1 // pred_check_branch
      %24 = sbr.rel (0) target = $region9
    $region8: #{tpu_custom_call.1} parent=1 // pred_region
      %s26 = ssub.s32 1024, 1024
      %27 = vsyncadd [#allocation6], %s26
      %s28 = sshll.u32 [#allocation5], 4
      %s29 = int_to_ptr.vmem [resolvable:$true] %s28
      %34 = dma.hbm_to_vmem [thread:$0]  %s1, 1024, %s29, [#allocation6], 64, 64, 4
    $region9: #{tpu_custom_call.1} parent=1 // pred_fallthru
      _
    // Predicated region
    $region10: #{tpu_custom_call.1} parent=1 // pred_check
      _
    $region11: #{tpu_custom_call.1} parent=1 // pred_check_branch
      %36 = sbr.rel (0) target = $region13
    $region12: #{tpu_custom_call.1} parent=1 // pred_region
      _
    $region13: #{tpu_custom_call.1} parent=1 // pred_fallthru
      _
    // Predicated region
    $region14: #{tpu_custom_call.1} parent=1 // pred_check
      _
    $region15: #{tpu_custom_call.1} parent=1 // pred_check_branch
      %38 = sbr.rel (0) target = $region17
    $region16: #{tpu_custom_call.1} parent=1 // pred_region
      %39 = dma.done [#allocation3], 1024
    $region17: #{tpu_custom_call.1} parent=1 // pred_fallthru
      _
    // Predicated region
    $region18: #{tpu_custom_call.1} parent=1 // pred_check
      _
    $region19: #{tpu_custom_call.1} parent=1 // pred_check_branch
      %41 = sbr.rel (0) target = $region21
    $region20: #{tpu_custom_call.1} parent=1 // pred_region
      %42 = dma.done [#allocation6], 1024
    $region21: #{tpu_custom_call.1} parent=1 // pred_fallthru
      _
    %v44 = vld [vmem:[#allocation2] sm:$0xf]
    %v45 = vld [vmem:[#allocation2 + $0x4] sm:$0xf]
    %v46 = vld [vmem:[#allocation2 + $0x8] sm:$0xf]
    %v47 = vld [vmem:[#allocation2 + $0xc] sm:$0xf]
    %v48 = vld [vmem:[#allocation2 + $0x10] sm:$0xf]
    %v49 = vld [vmem:[#allocation2 + $0x14] sm:$0xf]
    %v50 = vld [vmem:[#allocation2 + $0x18] sm:$0xf]
    %v51 = vld [vmem:[#allocation2 + $0x1c] sm:$0xf]
    %v52 = vld [vmem:[#allocation2 + $0x20] sm:$0xf]
    %v53 = vld [vmem:[#allocation2 + $0x24] sm:$0xf]
    %v54 = vld [vmem:[#allocation2 + $0x28] sm:$0xf]
    %v55 = vld [vmem:[#allocation2 + $0x2c] sm:$0xf]
    %v56 = vld [vmem:[#allocation2 + $0x30] sm:$0xf]
    %v57 = vld [vmem:[#allocation2 + $0x34] sm:$0xf]
    %v58 = vld [vmem:[#allocation2 + $0x38] sm:$0xf]
    %v59 = vld [vmem:[#allocation2 + $0x3c] sm:$0xf]
    %v60 = vld [vmem:[#allocation5] sm:$0xf]
    %v61 = vld [vmem:[#allocation5 + $0x4] sm:$0xf]
    %v62 = vld [vmem:[#allocation5 + $0x8] sm:$0xf]
    %v63 = vld [vmem:[#allocation5 + $0xc] sm:$0xf]
    %v64 = vld [vmem:[#allocation5 + $0x10] sm:$0xf]
    %v65 = vld [vmem:[#allocation5 + $0x14] sm:$0xf]
    %v66 = vld [vmem:[#allocation5 + $0x18] sm:$0xf]
    %v67 = vld [vmem:[#allocation5 + $0x1c] sm:$0xf]
    %v68 = vld [vmem:[#allocation5 + $0x20] sm:$0xf]
    %v69 = vld [vmem:[#allocation5 + $0x24] sm:$0xf]
    %v70 = vld [vmem:[#allocation5 + $0x28] sm:$0xf]
    %v71 = vld [vmem:[#allocation5 + $0x2c] sm:$0xf]
    %v72 = vld [vmem:[#allocation5 + $0x30] sm:$0xf]
    %v73 = vld [vmem:[#allocation5 + $0x34] sm:$0xf]
    %v74 = vld [vmem:[#allocation5 + $0x38] sm:$0xf]
    %v75 = vld [vmem:[#allocation5 + $0x3c] sm:$0xf]
    %v76 = vld [vmem:[%s2] sm:$0x1]
    %v78 = vlaneseq
    %v79 = vshrl.u32 %v78, 7
    %v80 = vsub.s32 0, %v79
    %v81 = vrot.slane %v76, %v80
    %v99 = vunpack.c.l.b16 %v44
    %v100 = vunpack.c.l.b16 %v45
    %v101 = vunpack.c.l.b16 %v46
    %v102 = vunpack.c.l.b16 %v47
    %v103 = vunpack.c.l.b16 %v48
    %v104 = vunpack.c.l.b16 %v49
    %v105 = vunpack.c.l.b16 %v50
    %v106 = vunpack.c.l.b16 %v51
    %v107 = vunpack.c.l.b16 %v52
    %v108 = vunpack.c.l.b16 %v53
    %v109 = vunpack.c.l.b16 %v54
    %v110 = vunpack.c.l.b16 %v55
    %v111 = vunpack.c.l.b16 %v56
    %v112 = vunpack.c.l.b16 %v57
    %v113 = vunpack.c.l.b16 %v58
    %v114 = vunpack.c.l.b16 %v59
    %v115 = vpack.c.b16 %v100, %v99
    %v116 = vpack.c.b16 %v102, %v101
    %v117 = vpack.c.b16 %v104, %v103
    %v118 = vpack.c.b16 %v106, %v105
    %v119 = vpack.c.b16 %v108, %v107
    %v120 = vpack.c.b16 %v110, %v109
    %v121 = vpack.c.b16 %v112, %v111
    %v122 = vpack.c.b16 %v114, %v113
    %v147 = vunpack.c.l.b16 %v60
    %v148 = vunpack.c.l.b16 %v61
    %v149 = vunpack.c.l.b16 %v62
    %v150 = vunpack.c.l.b16 %v63
    %v151 = vunpack.c.l.b16 %v64
    %v152 = vunpack.c.l.b16 %v65
    %v153 = vunpack.c.l.b16 %v66
    %v154 = vunpack.c.l.b16 %v67
    %v155 = vunpack.c.l.b16 %v68
    %v156 = vunpack.c.l.b16 %v69
    %v157 = vunpack.c.l.b16 %v70
    %v158 = vunpack.c.l.b16 %v71
    %v159 = vunpack.c.l.b16 %v72
    %v160 = vunpack.c.l.b16 %v73
    %v161 = vunpack.c.l.b16 %v74
    %v162 = vunpack.c.l.b16 %v75
    %v163 = vpack.c.b16 %v148, %v147
    %v164 = vpack.c.b16 %v150, %v149
    %v165 = vpack.c.b16 %v152, %v151
    %v166 = vpack.c.b16 %v154, %v153
    %v167 = vpack.c.b16 %v156, %v155
    %v168 = vpack.c.b16 %v158, %v157
    %v169 = vpack.c.b16 %v160, %v159
    %v170 = vpack.c.b16 %v162, %v161
    %179 = vmatprep.subr.bf16.mxu0 0
    %180 = vmatpush1.bf16.msra.mxu0 %v170
    %181 = vmatprep.subr.bf16.mxu0 0
    %182 = vmatpush1.bf16.msra.mxu0 %v169
    %183 = vmatprep.subr.bf16.mxu0 0
    %184 = vmatpush1.bf16.msra.mxu0 %v168
    %185 = vmatprep.subr.bf16.mxu0 0
    %186 = vmatpush1.bf16.msra.mxu0 %v167
    %187 = vmatprep.subr.bf16.mxu0 0
    %188 = vmatpush1.bf16.msra.mxu0 %v166
    %189 = vmatprep.subr.bf16.mxu0 0
    %190 = vmatpush1.bf16.msra.mxu0 %v165
    %191 = vmatprep.subr.bf16.mxu0 0
    %192 = vmatpush1.bf16.msra.mxu0 %v164
    %193 = vmatprep.subr.bf16.mxu0 0
    %194 = vmatpush1.bf16.msra.mxu0 %v163
    %195 = vmatprep.subr.bf16.mxu0 0
    %196 = vmatpush2.bf16.msra.mxu0 0
    %197 = vmatprep.subr.bf16.mxu0 0
    %198 = vmatpush2.bf16.msra.mxu0 0
    %199 = vmatprep.subr.bf16.mxu0 0
    %200 = vmatpush2.bf16.msra.mxu0 0
    %201 = vmatprep.subr.bf16.mxu0 0
    %202 = vmatpush2.bf16.msra.mxu0 0
    %203 = vmatprep.subr.bf16.mxu0 0
    %204 = vmatpush2.bf16.msra.mxu0 0
    %205 = vmatprep.subr.bf16.mxu0 0
    %206 = vmatpush2.bf16.msra.mxu0 0
    %207 = vmatprep.subr.bf16.mxu0 0
    %208 = vmatpush2.bf16.msra.mxu0 0
    %209 = vmatprep.subr.bf16.mxu0 0
    %210 = vmatpush2.bf16.msra.mxu0 0
    %211 = vmatprep.mubr.bf16.mxu0 0
    %212 = vmatmul.mubr.bf16.gmra.mxu0 %v115
    %v213 = vpop.f32.mrf.mxu0
    %v214 = vadd.f32 %v81, %v213
    %v215 = vpop.f32.mrf.mxu0
    %v216 = vpop.f32.mrf.mxu0
    %v217 = vadd.f32 %v81, %v216
    %v218 = vpop.f32.mrf.mxu0
    %219 = vmatprep.mubr.bf16.mxu0 0
    %220 = vmatmul.mubr.bf16.gmra.mxu0 %v116
    %v221 = vpop.f32.mrf.mxu0
    %v222 = vadd.f32 %v81, %v221
    %v223 = vpop.f32.mrf.mxu0
    %v224 = vpop.f32.mrf.mxu0
    %v225 = vadd.f32 %v81, %v224
    %v226 = vpop.f32.mrf.mxu0
    %227 = vmatprep.mubr.bf16.mxu0 0
    %228 = vmatmul.mubr.bf16.gmra.mxu0 %v117
    %v229 = vpop.f32.mrf.mxu0
    %v230 = vadd.f32 %v81, %v229
    %v231 = vpop.f32.mrf.mxu0
    %v232 = vpop.f32.mrf.mxu0
    %v233 = vadd.f32 %v81, %v232
    %v234 = vpop.f32.mrf.mxu0
    %235 = vmatprep.mubr.bf16.mxu0 0
    %236 = vmatmul.mubr.bf16.gmra.mxu0 %v118
    %v237 = vpop.f32.mrf.mxu0
    %v238 = vadd.f32 %v81, %v237
    %v239 = vpop.f32.mrf.mxu0
    %v240 = vpop.f32.mrf.mxu0
    %v241 = vadd.f32 %v81, %v240
    %v242 = vpop.f32.mrf.mxu0
    %243 = vmatprep.mubr.bf16.mxu0 0
    %244 = vmatmul.mubr.bf16.gmra.mxu0 %v119
    %v245 = vpop.f32.mrf.mxu0
    %v246 = vadd.f32 %v81, %v245
    %v247 = vpop.f32.mrf.mxu0
    %v248 = vpop.f32.mrf.mxu0
    %v249 = vadd.f32 %v81, %v248
    %v250 = vpop.f32.mrf.mxu0
    %251 = vmatprep.mubr.bf16.mxu0 0
    %252 = vmatmul.mubr.bf16.gmra.mxu0 %v120
    %v253 = vpop.f32.mrf.mxu0
    %v254 = vadd.f32 %v81, %v253
    %v255 = vpop.f32.mrf.mxu0
    %v256 = vpop.f32.mrf.mxu0
    %v257 = vadd.f32 %v81, %v256
    %v258 = vpop.f32.mrf.mxu0
    %259 = vmatprep.mubr.bf16.mxu0 0
    %260 = vmatmul.mubr.bf16.gmra.mxu0 %v121
    %v261 = vpop.f32.mrf.mxu0
    %v262 = vadd.f32 %v81, %v261
    %v263 = vpop.f32.mrf.mxu0
    %v264 = vpop.f32.mrf.mxu0
    %v265 = vadd.f32 %v81, %v264
    %v266 = vpop.f32.mrf.mxu0
    %267 = vmatprep.mubr.bf16.mxu0 0
    %268 = vmatmul.mubr.bf16.gmra.mxu0 %v122
    %v269 = vpop.f32.mrf.mxu0
    %v270 = vadd.f32 %v81, %v269
    %v271 = vpop.f32.mrf.mxu0
    %v272 = vpop.f32.mrf.mxu0
    %v273 = vadd.f32 %v81, %v272
    %v274 = vpop.f32.mrf.mxu0
    %275 = vdwg.mxu0
    %276 = vst [vmem:[#allocation7] sm:$0xff] %v214
    %277 = vst [vmem:[#allocation7 + $0x8] sm:$0xff] %v217
    %278 = vst [vmem:[#allocation7 + $0x10] sm:$0xff] %v222
    %279 = vst [vmem:[#allocation7 + $0x18] sm:$0xff] %v225
    %280 = vst [vmem:[#allocation7 + $0x20] sm:$0xff] %v230
    %281 = vst [vmem:[#allocation7 + $0x28] sm:$0xff] %v233
    %282 = vst [vmem:[#allocation7 + $0x30] sm:$0xff] %v238
    %283 = vst [vmem:[#allocation7 + $0x38] sm:$0xff] %v241
    %284 = vst [vmem:[#allocation7 + $0x40] sm:$0xff] %v246
    %285 = vst [vmem:[#allocation7 + $0x48] sm:$0xff] %v249
    %286 = vst [vmem:[#allocation7 + $0x50] sm:$0xff] %v254
    %287 = vst [vmem:[#allocation7 + $0x58] sm:$0xff] %v257
    %288 = vst [vmem:[#allocation7 + $0x60] sm:$0xff] %v262
    %289 = vst [vmem:[#allocation7 + $0x68] sm:$0xff] %v265
    %290 = vst [vmem:[#allocation7 + $0x70] sm:$0xff] %v270
    %291 = vst [vmem:[#allocation7 + $0x78] sm:$0xff] %v273
    // Predicated region
    $region22: #{tpu_custom_call.1} parent=1 // pred_check
      _
    $region23: #{tpu_custom_call.1} parent=1 // pred_check_branch
      %293 = sbr.rel (0) target = $region25
    $region24: #{tpu_custom_call.1} parent=1 // pred_region
      %s295 = ssub.s32 2048, 2048
      %296 = vsyncadd [#allocation4], %s295
      %s297 = sshll.u32 [#allocation7], 4
      %s298 = int_to_ptr.vmem [resolvable:$true] %s297
      %303 = dma.vmem_to_hbm [thread:$0]  %s298, 2048, %s3, [#allocation4], 128, 128, 8
    $region25: #{tpu_custom_call.1} parent=1 // pred_fallthru
      _
    // Predicated region
    $region26: #{tpu_custom_call.1} parent=1 // pred_check
      _
    $region27: #{tpu_custom_call.1} parent=1 // pred_check_branch
      %305 = sbr.rel (0) target = $region29
    $region28: #{tpu_custom_call.1} parent=1 // pred_region
      %306 = dma.done [#allocation4], 2048
    $region29: #{tpu_custom_call.1} parent=1 // pred_fallthru
      _
    %307 = vsyncpa [#allocation3], 1
    %308 = vsyncpa [#allocation6], 1
    %309 = vsyncpa [#allocation4], 1

// kernel: tpu_custom_call.1
$region0: #{tpu_custom_call.1}
  #allocation0 [shape = 'u32[]', space=smem, size = 0x4, offset = 0x4, fixed_abs, tag = 'smem constant byte address 0x4 - core index']
  #allocation1 [shape = 'u32[144,128]{1,0:T(1,128)}', space=vmem, size = 0x12000, scoped, tag = 'internal scratch']
  %s0 = inlined_call_operand.hbm [shape: bf16[128,128], index: 0, kind: input, shape index: {}]
  %s1 = inlined_call_operand.hbm [shape: bf16[128,128], index: 1, kind: input, shape index: {}]
  %s2 = inlined_call_operand.vmem [shape: f32[1,128], index: 2, kind: input, shape index: {}]
  %s3 = inlined_call_operand.hbm [shape: f32[128,128], index: 3, kind: output, shape index: {}]
  %s4 = sld [smem:[#allocation0]]
  $region30: #{tpu_custom_call.1} parent=0
    _
  %s6 = ssub.s32 1, %s4
  %s7 = scalar_select 0, %s6, %s4
  $region1: #{tpu_custom_call.1} parent=0
    #allocation2 [shape = 'u8[32768]{0}', space=vmem, size = 0x8000, scoped, tag = 'input window, operand 0, single buffered']
    #allocation3 [shape = 's32[1]{0}', space=sflag, size = 0x4, scoped, tag = 'scoped memory for tpu_custom_call.1']
    #allocation4 [shape = 's32[1]{0}', space=sflag, size = 0x4, scoped, tag = 'scoped memory for tpu_custom_call.1']
    #allocation5 [shape = 'u8[32768]{0}', space=vmem, size = 0x8000, scoped, tag = 'input window, operand 1, single buffered']
    #allocation6 [shape = 's32[1]{0}', space=sflag, size = 0x4, scoped, tag = 'scoped memory for tpu_custom_call.1']
    #allocation7 [shape = 'u8[65536]{0}', space=vmem, size = 0x10000, scoped, tag = 'output window, operand 0, single buffered']
    %8 = vsyncpa [#allocation3], 0
    %9 = vsyncpa [#allocation6], 0
    %10 = vsyncpa [#allocation4], 0
    // Predicated region
    $region2: #{tpu_custom_call.1} parent=1 // pred_check
      _
    $region3: #{tpu_custom_call.1} parent=1 // pred_check_branch
      %12 = sbr.rel (0) target = $region5
    $region4: #{tpu_custom_call.1} parent=1 // pred_region
      %s14 = ssub.s32 1024, 1024
      %15 = vsyncadd [#allocation3], %s14
      %s16 = sshll.u32 [#allocation2], 4
      %s17 = int_to_ptr.vmem [resolvable:$true] %s16
      %22 = dma.hbm_to_vmem [thread:$0]  %s0, 1024, %s17, [#allocation3], 64, 64, 4
    $region5: #{tpu_custom_call.1} parent=1 // pred_fallthru
      _
    // Predicated region
    $region6: #{tpu_custom_call.1} parent=1 // pred_check
      _
    $region7: #{tpu_custom_call.1} parent=1 // pred_check_branch
      %24 = sbr.rel (0) target = $region9
    $region8: #{tpu_custom_call.1} parent=1 // pred_region
      %s26 = ssub.s32 1024, 1024
      %27 = vsyncadd [#allocation6], %s26
      %s28 = sshll.u32 [#allocation5], 4
      %s29 = int_to_ptr.vmem [resolvable:$true] %s28
      %34 = dma.hbm_to_vmem [thread:$0]  %s1, 1024, %s29, [#allocation6], 64, 64, 4
    $region9: #{tpu_custom_call.1} parent=1 // pred_fallthru
      _
    // Predicated region
    $region10: #{tpu_custom_call.1} parent=1 // pred_check
      _
    $region11: #{tpu_custom_call.1} parent=1 // pred_check_branch
      %36 = sbr.rel (0) target = $region13
    $region12: #{tpu_custom_call.1} parent=1 // pred_region
      _
    $region13: #{tpu_custom_call.1} parent=1 // pred_fallthru
      _
    // Predicated region
    $region14: #{tpu_custom_call.1} parent=1 // pred_check
      _
    $region15: #{tpu_custom_call.1} parent=1 // pred_check_branch
      %38 = sbr.rel (0) target = $region17
    $region16: #{tpu_custom_call.1} parent=1 // pred_region
      %39 = dma.done [#allocation3], 1024
    $region17: #{tpu_custom_call.1} parent=1 // pred_fallthru
      _
    // Predicated region
    $region18: #{tpu_custom_call.1} parent=1 // pred_check
      _
    $region19: #{tpu_custom_call.1} parent=1 // pred_check_branch
      %41 = sbr.rel (0) target = $region21
    $region20: #{tpu_custom_call.1} parent=1 // pred_region
      %42 = dma.done [#allocation6], 1024
    $region21: #{tpu_custom_call.1} parent=1 // pred_fallthru
      _
    %v44 = vld [vmem:[#allocation2] sm:$0xf]
    %v45 = vld [vmem:[#allocation2 + $0x4] sm:$0xf]
    %v46 = vld [vmem:[#allocation2 + $0x8] sm:$0xf]
    %v47 = vld [vmem:[#allocation2 + $0xc] sm:$0xf]
    %v48 = vld [vmem:[#allocation2 + $0x10] sm:$0xf]
    %v49 = vld [vmem:[#allocation2 + $0x14] sm:$0xf]
    %v50 = vld [vmem:[#allocation2 + $0x18] sm:$0xf]
    %v51 = vld [vmem:[#allocation2 + $0x1c] sm:$0xf]
    %v52 = vld [vmem:[#allocation2 + $0x20] sm:$0xf]
    %v53 = vld [vmem:[#allocation2 + $0x24] sm:$0xf]
    %v54 = vld [vmem:[#allocation2 + $0x28] sm:$0xf]
    %v55 = vld [vmem:[#allocation2 + $0x2c] sm:$0xf]
    %v56 = vld [vmem:[#allocation2 + $0x30] sm:$0xf]
    %v57 = vld [vmem:[#allocation2 + $0x34] sm:$0xf]
    %v58 = vld [vmem:[#allocation2 + $0x38] sm:$0xf]
    %v59 = vld [vmem:[#allocation2 + $0x3c] sm:$0xf]
    %v60 = vld [vmem:[#allocation5] sm:$0xf]
    %v61 = vld [vmem:[#allocation5 + $0x4] sm:$0xf]
    %v62 = vld [vmem:[#allocation5 + $0x8] sm:$0xf]
    %v63 = vld [vmem:[#allocation5 + $0xc] sm:$0xf]
    %v64 = vld [vmem:[#allocation5 + $0x10] sm:$0xf]
    %v65 = vld [vmem:[#allocation5 + $0x14] sm:$0xf]
    %v66 = vld [vmem:[#allocation5 + $0x18] sm:$0xf]
    %v67 = vld [vmem:[#allocation5 + $0x1c] sm:$0xf]
    %v68 = vld [vmem:[#allocation5 + $0x20] sm:$0xf]
    %v69 = vld [vmem:[#allocation5 + $0x24] sm:$0xf]
    %v70 = vld [vmem:[#allocation5 + $0x28] sm:$0xf]
    %v71 = vld [vmem:[#allocation5 + $0x2c] sm:$0xf]
    %v72 = vld [vmem:[#allocation5 + $0x30] sm:$0xf]
    %v73 = vld [vmem:[#allocation5 + $0x34] sm:$0xf]
    %v74 = vld [vmem:[#allocation5 + $0x38] sm:$0xf]
    %v75 = vld [vmem:[#allocation5 + $0x3c] sm:$0xf]
    %v76 = vld [vmem:[%s2] sm:$0x1]
    %v78 = vlaneseq
    %v79 = vshrl.u32 %v78, 7
    %v80 = vsub.s32 0, %v79
    %v81 = vrot.slane %v76, %v80
    %v99 = vunpack.c.l.b16 %v44
    %v100 = vunpack.c.l.b16 %v45
    %v101 = vunpack.c.l.b16 %v46
    %v102 = vunpack.c.l.b16 %v47
    %v103 = vunpack.c.l.b16 %v48
    %v104 = vunpack.c.l.b16 %v49
    %v105 = vunpack.c.l.b16 %v50
    %v106 = vunpack.c.l.b16 %v51
    %v107 = vunpack.c.l.b16 %v52
    %v108 = vunpack.c.l.b16 %v53
    %v109 = vunpack.c.l.b16 %v54
    %v110 = vunpack.c.l.b16 %v55
    %v111 = vunpack.c.l.b16 %v56
    %v112 = vunpack.c.l.b16 %v57
    %v113 = vunpack.c.l.b16 %v58
    %v114 = vunpack.c.l.b16 %v59
    %v115 = vpack.c.b16 %v100, %v99
    %v116 = vpack.c.b16 %v102, %v101
    %v117 = vpack.c.b16 %v104, %v103
    %v118 = vpack.c.b16 %v106, %v105
    %v119 = vpack.c.b16 %v108, %v107
    %v120 = vpack.c.b16 %v110, %v109
    %v121 = vpack.c.b16 %v112, %v111
    %v122 = vpack.c.b16 %v114, %v113
    %v147 = vunpack.c.l.b16 %v60
    %v148 = vunpack.c.l.b16 %v61
    %v149 = vunpack.c.l.b16 %v62
    %v150 = vunpack.c.l.b16 %v63
    %v151 = vunpack.c.l.b16 %v64
    %v152 = vunpack.c.l.b16 %v65
    %v153 = vunpack.c.l.b16 %v66
    %v154 = vunpack.c.l.b16 %v67
    %v155 = vunpack.c.l.b16 %v68
    %v156 = vunpack.c.l.b16 %v69
    %v157 = vunpack.c.l.b16 %v70
    %v158 = vunpack.c.l.b16 %v71
    %v159 = vunpack.c.l.b16 %v72
    %v160 = vunpack.c.l.b16 %v73
    %v161 = vunpack.c.l.b16 %v74
    %v162 = vunpack.c.l.b16 %v75
    %v163 = vpack.c.b16 %v148, %v147
    %v164 = vpack.c.b16 %v150, %v149
    %v165 = vpack.c.b16 %v152, %v151
    %v166 = vpack.c.b16 %v154, %v153
    %v167 = vpack.c.b16 %v156, %v155
    %v168 = vpack.c.b16 %v158, %v157
    %v169 = vpack.c.b16 %v160, %v159
    %v170 = vpack.c.b16 %v162, %v161
    %179 = vmatprep.subr.bf16.mxu0 0
    %180 = vmatpush1.bf16.msra.mxu0 %v170
    %181 = vmatprep.subr.bf16.mxu0 0
    %182 = vmatpush1.bf16.msra.mxu0 %v169
    %183 = vmatprep.subr.bf16.mxu0 0
    %184 = vmatpush1.bf16.msra.mxu0 %v168
    %185 = vmatprep.subr.bf16.mxu0 0
    %186 = vmatpush1.bf16.msra.mxu0 %v167
    %187 = vmatprep.subr.bf16.mxu0 0
    %188 = vmatpush1.bf16.msra.mxu0 %v166
    %189 = vmatprep.subr.bf16.mxu0 0
    %190 = vmatpush1.bf16.msra.mxu0 %v165
    %191 = vmatprep.subr.bf16.mxu0 0
    %192 = vmatpush1.bf16.msra.mxu0 %v164
    %193 = vmatprep.subr.bf16.mxu0 0
    %194 = vmatpush1.bf16.msra.mxu0 %v163
    %195 = vmatprep.subr.bf16.mxu0 0
    %196 = vmatpush2.bf16.msra.mxu0 0
    %197 = vmatprep.subr.bf16.mxu0 0
    %198 = vmatpush2.bf16.msra.mxu0 0
    %199 = vmatprep.subr.bf16.mxu0 0
    %200 = vmatpush2.bf16.msra.mxu0 0
    %201 = vmatprep.subr.bf16.mxu0 0
    %202 = vmatpush2.bf16.msra.mxu0 0
    %203 = vmatprep.subr.bf16.mxu0 0
    %204 = vmatpush2.bf16.msra.mxu0 0
    %205 = vmatprep.subr.bf16.mxu0 0
    %206 = vmatpush2.bf16.msra.mxu0 0
    %207 = vmatprep.subr.bf16.mxu0 0
    %208 = vmatpush2.bf16.msra.mxu0 0
    %209 = vmatprep.subr.bf16.mxu0 0
    %210 = vmatpush2.bf16.msra.mxu0 0
    %211 = vmatprep.mubr.bf16.mxu0 0
    %212 = vmatmul.mubr.bf16.gmra.mxu0 %v115
    %v213 = vpop.f32.mrf.mxu0
    %v214 = vadd.f32 %v81, %v213
    %v215 = vpop.f32.mrf.mxu0
    %v216 = vpop.f32.mrf.mxu0
    %v217 = vadd.f32 %v81, %v216
    %v218 = vpop.f32.mrf.mxu0
    %219 = vmatprep.mubr.bf16.mxu0 0
    %220 = vmatmul.mubr.bf16.gmra.mxu0 %v116
    %v221 = vpop.f32.mrf.mxu0
    %v222 = vadd.f32 %v81, %v221
    %v223 = vpop.f32.mrf.mxu0
    %v224 = vpop.f32.mrf.mxu0
    %v225 = vadd.f32 %v81, %v224
    %v226 = vpop.f32.mrf.mxu0
    %227 = vmatprep.mubr.bf16.mxu0 0
    %228 = vmatmul.mubr.bf16.gmra.mxu0 %v117
    %v229 = vpop.f32.mrf.mxu0
    %v230 = vadd.f32 %v81, %v229
    %v231 = vpop.f32.mrf.mxu0
    %v232 = vpop.f32.mrf.mxu0
    %v233 = vadd.f32 %v81, %v232
    %v234 = vpop.f32.mrf.mxu0
    %235 = vmatprep.mubr.bf16.mxu0 0
    %236 = vmatmul.mubr.bf16.gmra.mxu0 %v118
    %v237 = vpop.f32.mrf.mxu0
    %v238 = vadd.f32 %v81, %v237
    %v239 = vpop.f32.mrf.mxu0
    %v240 = vpop.f32.mrf.mxu0
    %v241 = vadd.f32 %v81, %v240
    %v242 = vpop.f32.mrf.mxu0
    %243 = vmatprep.mubr.bf16.mxu0 0
    %244 = vmatmul.mubr.bf16.gmra.mxu0 %v119
    %v245 = vpop.f32.mrf.mxu0
    %v246 = vadd.f32 %v81, %v245
    %v247 = vpop.f32.mrf.mxu0
    %v248 = vpop.f32.mrf.mxu0
    %v249 = vadd.f32 %v81, %v248
    %v250 = vpop.f32.mrf.mxu0
    %251 = vmatprep.mubr.bf16.mxu0 0
    %252 = vmatmul.mubr.bf16.gmra.mxu0 %v120
    %v253 = vpop.f32.mrf.mxu0
    %v254 = vadd.f32 %v81, %v253
    %v255 = vpop.f32.mrf.mxu0
    %v256 = vpop.f32.mrf.mxu0
    %v257 = vadd.f32 %v81, %v256
    %v258 = vpop.f32.mrf.mxu0
    %259 = vmatprep.mubr.bf16.mxu0 0
    %260 = vmatmul.mubr.bf16.gmra.mxu0 %v121
    %v261 = vpop.f32.mrf.mxu0
    %v262 = vadd.f32 %v81, %v261
    %v263 = vpop.f32.mrf.mxu0
    %v264 = vpop.f32.mrf.mxu0
    %v265 = vadd.f32 %v81, %v264
    %v266 = vpop.f32.mrf.mxu0
    %267 = vmatprep.mubr.bf16.mxu0 0
    %268 = vmatmul.mubr.bf16.gmra.mxu0 %v122
    %v269 = vpop.f32.mrf.mxu0
    %v270 = vadd.f32 %v81, %v269
    %v271 = vpop.f32.mrf.mxu0
    %v272 = vpop.f32.mrf.mxu0
    %v273 = vadd.f32 %v81, %v272
    %v274 = vpop.f32.mrf.mxu0
    %275 = vdwg.mxu0
    %276 = vst [vmem:[#allocation7] sm:$0xff] %v214
    %277 = vst [vmem:[#allocation7 + $0x8] sm:$0xff] %v217
    %278 = vst [vmem:[#allocation7 + $0x10] sm:$0xff] %v222
    %279 = vst [vmem:[#allocation7 + $0x18] sm:$0xff] %v225
    %280 = vst [vmem:[#allocation7 + $0x20] sm:$0xff] %v230
    %281 = vst [vmem:[#allocation7 + $0x28] sm:$0xff] %v233
    %282 = vst [vmem:[#allocation7 + $0x30] sm:$0xff] %v238
    %283 = vst [vmem:[#allocation7 + $0x38] sm:$0xff] %v241
    %284 = vst [vmem:[#allocation7 + $0x40] sm:$0xff] %v246
    %285 = vst [vmem:[#allocation7 + $0x48] sm:$0xff] %v249
    %286 = vst [vmem:[#allocation7 + $0x50] sm:$0xff] %v254
    %287 = vst [vmem:[#allocation7 + $0x58] sm:$0xff] %v257
    %288 = vst [vmem:[#allocation7 + $0x60] sm:$0xff] %v262
    %289 = vst [vmem:[#allocation7 + $0x68] sm:$0xff] %v265
    %290 = vst [vmem:[#allocation7 + $0x70] sm:$0xff] %v270
    %291 = vst [vmem:[#allocation7 + $0x78] sm:$0xff] %v273
    // Predicated region
    $region22: #{tpu_custom_call.1} parent=1 // pred_check
      _
    $region23: #{tpu_custom_call.1} parent=1 // pred_check_branch
      %293 = sbr.rel (0) target = $region25
    $region24: #{tpu_custom_call.1} parent=1 // pred_region
      %s295 = ssub.s32 2048, 2048
      %296 = vsyncadd [#allocation4], %s295
      %s297 = sshll.u32 [#allocation7], 4
      %s298 = int_to_ptr.vmem [resolvable:$true] %s297
      %303 = dma.vmem_to_hbm [thread:$0]  %s298, 2048, %s3, [#allocation4], 128, 128, 8
    $region25: #{tpu_custom_call.1} parent=1 // pred_fallthru
      _
    // Predicated region
    $region26: #{tpu_custom_call.1} parent=1 // pred_check
      _
    $region27: #{tpu_custom_call.1} parent=1 // pred_check_branch
      %305 = sbr.rel (0) target = $region29
    $region28: #{tpu_custom_call.1} parent=1 // pred_region
      %306 = dma.done [#allocation4], 2048
    $region29: #{tpu_custom_call.1} parent=1 // pred_fallthru
      _
    %307 = vsyncpa [#allocation3], 1
    %308 = vsyncpa [#allocation6], 1
    %309 = vsyncpa [#allocation4], 1

</llo_original>
